<compile_context>
chip_gen: v6e
topology: v6e:2x2x1
jax: 0.10.0
libtpu: 0.0.40
codegen_flags: <defaults>
</compile_context>

<pallas_src>
import functools

import numpy as np
import jax
import jax.numpy as jnp
from jax.experimental import pallas as pl
from jax.experimental.pallas import tpu as pltpu


# ----------------------------------------------------------------------------
# Shared helpers
# ----------------------------------------------------------------------------
def _sigmoid_eup(x):
    """Sigmoid via EUP ops only: exp + approx reciprocal + 1 Newton step."""
    denom = 1.0 + jnp.exp(-x)
    r = pl.reciprocal(denom, approx=True)
    return r * (2.0 - denom * r)  # Newton-Raphson: restores ~f32 accuracy


def _cost_estimate(N, Cin, Cout, S, itemsize):
    return pl.CostEstimate(
        flops=2 * N * S * Cin * Cout,
        transcendentals=N * S * Cout,
        bytes_accessed=N * S * (Cin + Cout) * itemsize + (Cout * Cin + Cout) * 4,
    )


# ----------------------------------------------------------------------------
# Dense VPU path (S % 128 == 0, small channel counts) — the common U-Net head
# ----------------------------------------------------------------------------
def _pick_dense_tiles(N, Cin, Cout, Sb,
                      target_x_bytes=6 << 20, max_foot_bytes=30 << 20):
    """Pick (nb, tSb) so the x tile is ~target bytes and the double-buffered
    in+out footprint stays under max_foot_bytes (fits v7x's 64 MiB VMEM)."""
    unit_x = Cin * 128 * 4                       # x bytes per (image, 128 pixels)
    unit_foot = 2 * (Cin + Cout) * 128 * 4       # dbl-buffered in+out per unit
    u = max(1, min(target_x_bytes // unit_x, max_foot_bytes // unit_foot))

    if Sb <= u or Sb < 8:
        tSb = Sb                                 # full spatial extent per step
        nb = int(min(N, max(1, u // max(Sb, 1))))
    else:
        tSb = max(8, min((u // 8) * 8, (Sb // 8) * 8))
        nb = 1

    # Guarantee >= 2 grid blocks when possible so both v7x TensorCores get work.
    if pl.cdiv(N, nb) * pl.cdiv(Sb, tSb) == 1:
        if N >= 2:
            nb = (N + 1) // 2
        elif Sb >= 16:
            tSb = max(8, ((Sb // 2 + 7) // 8) * 8)
    return int(nb), int(tSb)


def _outconv_vpu_kernel(w_ref, b_ref, x_ref, o_ref):
    # w_ref: SMEM (Cout, Cin) f32   b_ref: SMEM (Cout,) f32
    # x_ref: VMEM (nb, Cin, tSb, 128)   o_ref: VMEM (nb, Cout, tSb, 128)
    cout, cin = w_ref.shape
    for o in range(cout):                         # unrolled: cout is tiny/static
        acc = x_ref[:, 0, :, :].astype(jnp.float32) * w_ref[o, 0] + b_ref[o]
        for c in range(1, cin):                   # unrolled broadcast-FMA on VPU
            acc = acc + x_ref[:, c, :, :].astype(jnp.float32) * w_ref[o, c]
        o_ref[:, o, :, :] = _sigmoid_eup(acc).astype(o_ref.dtype)


def _outconv_dense(x3, w2, b1, N, Cin, Cout, S, out_dtype):
    Sb = S // 128
    x4 = x3.reshape(N, Cin, Sb, 128)              # bitcast reshape, no data move
    nb, tSb = _pick_dense_tiles(N, Cin, Cout, Sb)
    grid = (pl.cdiv(N, nb), pl.cdiv(Sb, tSb))

    foot = 2 * nb * tSb * 128 * 4 * (Cin + Cout)  # double-buffered in+out tiles
    vmem_limit = int(min(48 << 20, foot + (16 << 20)))

    out4 = pl.pallas_call(
        _outconv_vpu_kernel,
        out_shape=jax.ShapeDtypeStruct((N, Cout, Sb, 128), out_dtype),
        grid_spec=pltpu.PrefetchScalarGridSpec(
            num_scalar_prefetch=0,
            grid=grid,
            in_specs=[
                pl.BlockSpec(memory_space=pltpu.MemorySpace.SMEM),   # weights
                pl.BlockSpec(memory_space=pltpu.MemorySpace.SMEM),   # bias
                pl.BlockSpec((nb, Cin, tSb, 128), lambda n, s: (n, 0, s, 0)),
            ],
            out_specs=pl.BlockSpec((nb, Cout, tSb, 128),
                                   lambda n, s: (n, 0, s, 0)),
        ),
        compiler_params=pltpu.CompilerParams(
            dimension_semantics=("parallel", "parallel"),
            vmem_limit_bytes=vmem_limit),
        cost_estimate=_cost_estimate(N, Cin, Cout, S, jnp.dtype(out_dtype).itemsize),
    )(w2, b1, x4)
    return out4.reshape(N, Cout, S)


# ----------------------------------------------------------------------------
# General MXU fallback path (ragged spatial or wide channel counts)
# ----------------------------------------------------------------------------
def _pick_spatial_tile(S, Cin, Cout, budget_bytes=24 << 20):
    """Largest lane-dense spatial tile; budget counts 8-sublane VMEM padding
    and double buffering of both the x and out tiles."""
    if S <= 128:
        return S                                  # full-extent last dim is legal
    per_lane = (max(Cin, 8) + max(Cout, 8)) * 4 * 2
    cap = max(128, budget_bytes // per_lane)
    t = min(S, cap)
    return max(128, (t // 128) * 128)


def _outconv_mxu_kernel(x_ref, w_ref, b_ref, o_ref):
    # x_ref: (Cin, tS)  w_ref: (Cout, Cin)  b_ref: (Cout, 1)  o_ref: (Cout, tS)
    acc = jnp.dot(w_ref[...], x_ref[...], preferred_element_type=jnp.float32)
    o_ref[...] = _sigmoid_eup(acc + b_ref[...]).astype(o_ref.dtype)


def _outconv_mxu(x3, w2, b1, N, Cin, Cout, S, out_dtype):
    tS = _pick_spatial_tile(S, Cin, Cout)
    grid = (N, pl.cdiv(S, tS))
    foot = 2 * (max(Cin, 8) + max(Cout, 8)) * tS * 4
    vmem_limit = int(min(48 << 20, foot + (16 << 20)))

    out = pl.pallas_call(
        _outconv_mxu_kernel,
        out_shape=jax.ShapeDtypeStruct((N, Cout, S), out_dtype),
        grid_spec=pltpu.PrefetchScalarGridSpec(
            num_scalar_prefetch=0,
            grid=grid,
            in_specs=[
                pl.BlockSpec((None, Cin, tS), lambda n, s: (n, 0, s)),   # x tile
                pl.BlockSpec((Cout, Cin), lambda n, s: (0, 0)),          # weight
                pl.BlockSpec((Cout, 1), lambda n, s: (0, 0)),            # bias
            ],
            out_specs=pl.BlockSpec((None, Cout, tS), lambda n, s: (n, 0, s)),
        ),
        compiler_params=pltpu.CompilerParams(
            dimension_semantics=("parallel", "parallel"),
            vmem_limit_bytes=vmem_limit),
        cost_estimate=_cost_estimate(N, Cin, Cout, S, jnp.dtype(out_dtype).itemsize),
    )(x3, w2, b1.reshape(Cout, 1))
    return out


# ----------------------------------------------------------------------------
# Public entry point + reference
# ----------------------------------------------------------------------------
def outconv_reference(x, w, b):
    """Plain-JAX reference: Conv2d(in, out, 1) + sigmoid."""
    w2 = w.reshape(w.shape[0], w.shape[1])
    y = jnp.einsum('nchw,oc->nohw', x, w2) + b.reshape(1, -1, 1, 1)
    return jax.nn.sigmoid(y)


def outconv_forward(x, w, b, *, force_pallas=False):
    """1x1 conv + sigmoid.  x: (N,Cin,H,W) NCHW, w: (Cout,Cin,1,1), b: (Cout,)."""
    N, Cin, H, W = x.shape
    Cout = w.shape[0]
    S = H * W

    # Tiny problems: custom-call/grid-priming overhead dominates; let XLA fuse.
    total_bytes = int(N * Cin * S) * x.dtype.itemsize
    if not force_pallas and total_bytes < (256 << 10):
        return outconv_reference(x, w, b)

    x3 = x.reshape(N, Cin, S)                     # bitcast reshape
    w2 = w.reshape(Cout, Cin).astype(jnp.float32)
    b1 = b.reshape(Cout).astype(jnp.float32)

    if S % 128 == 0 and Cout <= 8 and Cin <= 128:
        out = _outconv_dense(x3, w2, b1, N, Cin, Cout, S, x.dtype)
    else:
        out = _outconv_mxu(x3, w2, b1, N, Cin, Cout, S, x.dtype)
    return out.reshape(N, Cout, H, W)


# ----------------------------------------------------------------------------
# Self-test
# ----------------------------------------------------------------------------
if __name__ == "__main__":
    key = jax.random.PRNGKey(0)
    kx, kw, kb = jax.random.split(key, 3)

    def run_case(x_shape, cout, force_pallas=True, tol=5e-5):
        n, cin, h, w = x_shape
        x = jax.random.normal(kx, x_shape, jnp.float32)
        wt = jax.random.normal(kw, (cout, cin, 1, 1), jnp.float32) / np.sqrt(cin)
        bias = jax.random.normal(kb, (cout,), jnp.float32) * 0.1
        fwd = jax.jit(functools.partial(outconv_forward, force_pallas=force_pallas))
        y = jax.block_until_ready(fwd(x, wt, bias))
        y_ref = outconv_reference(x, wt, bias)
        assert y.shape == (n, cout, h, w), y.shape
        assert bool(jnp.all(jnp.isfinite(y)))
        assert bool(jnp.all((y >= 0.0) & (y <= 1.0)))      # sigmoid output range
        np.testing.assert_allclose(np.asarray(y), np.asarray(y_ref),
                                   rtol=tol, atol=tol)

    # Primary config: batch=2, in_ch=4, out_ch=1, 16x16 — dense VPU Pallas path.
    run_case((2, 4, 16, 16), 1)
    # U-Net-like head 32 -> 3 channels — dense path, multi-channel unrolled FMA.
    run_case((1, 32, 16, 16), 3)
    # Larger spatial extent — exercises batch/spatial blocking and >=2 blocks.
    run_case((2, 3, 128, 128), 1)
    # Ragged spatial (S % 128 != 0) — exercises the general MXU fallback path.
    run_case((2, 4, 12, 10), 2)
    # Tiny-problem automatic fallback to plain JAX (no Pallas) — sanity check.
    run_case((2, 4, 16, 16), 1, force_pallas=False, tol=1e-5)

    print("KERNEL_OK")
</pallas_src>

<mosaic_0001>
module attributes {stable_mosaic.version = 11 : i64} {
  func.func @_outconv_vpu_kernel(%arg0: i32, %arg1: i32, %arg2: memref<1x4xf32, #tpu.memory_space<smem>>, %arg3: memref<1xf32, #tpu.memory_space<smem>>, %arg4: memref<1x4x2x128xf32, #tpu.memory_space<vmem>>, %arg5: memref<1x1x2x128xf32, #tpu.memory_space<vmem>>) attributes {dimension_semantics = [#tpu.dimension_semantics<parallel>, #tpu.dimension_semantics<parallel>], iteration_bounds = array<i64: 2, 1>, scalar_prefetch = 0 : i64, scratch_operands = 0 : i64, tpu.core_type = #tpu.core_type<tc>, window_params = [{transform_indices = @transform_0, window_bounds = array<i64: 1, 4>}, {transform_indices = @transform_1, window_bounds = array<i64: 1>}, {transform_indices = @transform_2, window_bounds = array<i64: 1, 4, 2, 128>}, {transform_indices = @transform_3, window_bounds = array<i64: 1, 1, 2, 128>}]} {
    %c0 = arith.constant 0 : index
    %c0_0 = arith.constant 0 : index
    %c0_1 = arith.constant 0 : index
    %c0_2 = arith.constant 0 : index
    %0 = vector.load %arg4[%c0, %c0_0, %c0_1, %c0_2] : memref<1x4x2x128xf32, #tpu.memory_space<vmem>>, vector<1x1x2x128xf32>
    %1 = vector.shape_cast %0 : vector<1x1x2x128xf32> to vector<1x2x128xf32>
    %c0_3 = arith.constant 0 : index
    %c0_4 = arith.constant 0 : index
    %2 = memref.load %arg2[%c0_3, %c0_4] : memref<1x4xf32, #tpu.memory_space<smem>>
    %3 = vector.broadcast %2 : f32 to vector<1x2x128xf32>
    %4 = arith.mulf %1, %3 : vector<1x2x128xf32>
    %c0_5 = arith.constant 0 : index
    %5 = memref.load %arg3[%c0_5] : memref<1xf32, #tpu.memory_space<smem>>
    %6 = vector.broadcast %5 : f32 to vector<1x2x128xf32>
    %7 = arith.addf %4, %6 : vector<1x2x128xf32>
    %c0_6 = arith.constant 0 : index
    %c1 = arith.constant 1 : index
    %c0_7 = arith.constant 0 : index
    %c0_8 = arith.constant 0 : index
    %8 = vector.load %arg4[%c0_6, %c1, %c0_7, %c0_8] : memref<1x4x2x128xf32, #tpu.memory_space<vmem>>, vector<1x1x2x128xf32>
    %9 = vector.shape_cast %8 : vector<1x1x2x128xf32> to vector<1x2x128xf32>
    %c0_9 = arith.constant 0 : index
    %c1_10 = arith.constant 1 : index
    %10 = memref.load %arg2[%c0_9, %c1_10] : memref<1x4xf32, #tpu.memory_space<smem>>
    %11 = vector.broadcast %10 : f32 to vector<1x2x128xf32>
    %12 = arith.mulf %9, %11 : vector<1x2x128xf32>
    %13 = arith.addf %7, %12 : vector<1x2x128xf32>
    %c0_11 = arith.constant 0 : index
    %c2 = arith.constant 2 : index
    %c0_12 = arith.constant 0 : index
    %c0_13 = arith.constant 0 : index
    %14 = vector.load %arg4[%c0_11, %c2, %c0_12, %c0_13] : memref<1x4x2x128xf32, #tpu.memory_space<vmem>>, vector<1x1x2x128xf32>
    %15 = vector.shape_cast %14 : vector<1x1x2x128xf32> to vector<1x2x128xf32>
    %c0_14 = arith.constant 0 : index
    %c2_15 = arith.constant 2 : index
    %16 = memref.load %arg2[%c0_14, %c2_15] : memref<1x4xf32, #tpu.memory_space<smem>>
    %17 = vector.broadcast %16 : f32 to vector<1x2x128xf32>
    %18 = arith.mulf %15, %17 : vector<1x2x128xf32>
    %19 = arith.addf %13, %18 : vector<1x2x128xf32>
    %c0_16 = arith.constant 0 : index
    %c3 = arith.constant 3 : index
    %c0_17 = arith.constant 0 : index
    %c0_18 = arith.constant 0 : index
    %20 = vector.load %arg4[%c0_16, %c3, %c0_17, %c0_18] : memref<1x4x2x128xf32, #tpu.memory_space<vmem>>, vector<1x1x2x128xf32>
    %21 = vector.shape_cast %20 : vector<1x1x2x128xf32> to vector<1x2x128xf32>
    %c0_19 = arith.constant 0 : index
    %c3_20 = arith.constant 3 : index
    %22 = memref.load %arg2[%c0_19, %c3_20] : memref<1x4xf32, #tpu.memory_space<smem>>
    %23 = vector.broadcast %22 : f32 to vector<1x2x128xf32>
    %24 = arith.mulf %21, %23 : vector<1x2x128xf32>
    %25 = arith.addf %19, %24 : vector<1x2x128xf32>
    %cst = arith.constant 0.000000e+00 : f32
    %26 = vector.broadcast %cst : f32 to vector<1x2x128xf32>
    %27 = arith.subf %26, %25 : vector<1x2x128xf32>
    %28 = math.exp %27 : vector<1x2x128xf32>
    %cst_21 = arith.constant 1.000000e+00 : f32
    %29 = vector.broadcast %cst_21 : f32 to vector<1x2x128xf32>
    %30 = arith.addf %29, %28 : vector<1x2x128xf32>
    %31 = tpu.reciprocal %30 {approx = true} : vector<1x2x128xf32> -> vector<1x2x128xf32>
    %32 = arith.mulf %30, %31 : vector<1x2x128xf32>
    %cst_22 = arith.constant 2.000000e+00 : f32
    %33 = vector.broadcast %cst_22 : f32 to vector<1x2x128xf32>
    %34 = arith.subf %33, %32 : vector<1x2x128xf32>
    %35 = arith.mulf %31, %34 : vector<1x2x128xf32>
    %c0_23 = arith.constant 0 : index
    %c0_24 = arith.constant 0 : index
    %c0_25 = arith.constant 0 : index
    %c0_26 = arith.constant 0 : index
    %36 = vector.load %arg5[%c0_23, %c0_24, %c0_25, %c0_26] : memref<1x1x2x128xf32, #tpu.memory_space<vmem>>, vector<1x1x2x128xf32>
    %37 = vector.shape_cast %36 : vector<1x1x2x128xf32> to vector<1x2x128xf32>
    %38 = vector.shape_cast %35 : vector<1x2x128xf32> to vector<1x1x2x128xf32>
    tpu.vector_store %arg5[%c0_23, %c0_24, %c0_25, %c0_26], %38 {strides = array<i32>} : memref<1x1x2x128xf32, #tpu.memory_space<vmem>>, vector<1x1x2x128xf32>,
    return
  }
  func.func @transform_0(%arg0: i32, %arg1: i32) -> (i32, i32) {
    %c0_i32 = arith.constant 0 : i32
    %c0_i32_0 = arith.constant 0 : i32
    %c0_i32_1 = arith.constant 0 : i32
    return %c0_i32, %c0_i32_0 : i32, i32
  }
  func.func @transform_1(%arg0: i32, %arg1: i32) -> i32 {
    %c0_i32 = arith.constant 0 : i32
    %c0_i32_0 = arith.constant 0 : i32
    return %c0_i32 : i32
  }
  func.func @transform_2(%arg0: i32, %arg1: i32) -> (i32, i32, i32, i32) {
    %c0_i32 = arith.constant 0 : i32
    %c0_i32_0 = arith.constant 0 : i32
    %c0_i32_1 = arith.constant 0 : i32
    return %arg0, %c0_i32, %arg1, %c0_i32_0 : i32, i32, i32, i32
  }
  func.func @transform_3(%arg0: i32, %arg1: i32) -> (i32, i32, i32, i32) {
    %c0_i32 = arith.constant 0 : i32
    %c0_i32_0 = arith.constant 0 : i32
    %c0_i32_1 = arith.constant 0 : i32
    return %arg0, %c0_i32, %arg1, %c0_i32_0 : i32, i32, i32, i32
  }
}

</mosaic_0001>

<llo_original>
// kernel: outconv_forward.1
$region0: #{outconv_forward.1}
  #allocation0 [shape = 'u32[]', space=smem, size = 0x4, offset = 0x4, fixed_abs, tag = 'smem constant byte address 0x4 - core index']
  #allocation1 [shape = 'u32[144,128]{1,0:T(1,128)}', space=vmem, size = 0x12000, scoped, tag = 'internal scratch']
  #allocation2 [shape = 'f32[1]{0:T(128)S(6)}', space=smem, size = 0x200, scoped, tag = 'scoped memory for outconv_forward.1']
  %s0 = inlined_call_operand.vmem [shape: f32[1,4], index: 0, kind: input, shape index: {}]
  %s1 = inlined_call_operand.<no memory space> [shape: f32[1], index: 1, kind: input, shape index: {}]
  %s2 = inlined_call_operand.vmem [shape: f32[2,4,2,128], index: 2, kind: input, shape index: {}]
  %s3 = inlined_call_operand.vmem [shape: f32[2,1,2,128], index: 3, kind: output, shape index: {}]
  %s4 = sld [smem:[#allocation0]]
  $region49: #{outconv_forward.1} parent=0
    _
  %s6 = ssub.s32 1, %s4
  %s7 = scalar_select 0, %s6, %s4
  %8 = sst [smem:[#allocation2]] %s1
  $region1: #{outconv_forward.1} parent=0
    #allocation3 [shape = 'u8[512]{0}', space=smem, size = 0x200, scoped, tag = 'input window, operand 0, single buffered']
    #allocation4 [shape = 's32[2]{0}', space=sflag, size = 0x8, scoped, tag = 'scoped memory for outconv_forward.1']
    %9 = vsyncpa [#allocation4], 0
    loop: start=0, step=1, limit=4
    $region2: #{outconv_forward.1} parent=1 // loop_pre_header
      _
    $region3: #{outconv_forward.1} parent=1 // loop_header
      %s11 = sphi 0, %s15
      %p12 = scmp.ge.s32.totalorder %s11, 4
      %s18 = sphi 0, %s30
      %s19 = sphi 0, %s26
      %s20 = sphi 0, %s18
      %s21 = sphi 0, %s19
      %s22 = sphi 0, %s20
      %s23 = sphi 0, %s21
      %s31 = sphi 0, %s31
      %s33 = sphi 0, %s31
      %s34 = sphi 0, %s33
      %s48 = sphi 0, %s34
      %s52 = sphi 0, %s52
      %s54 = sphi 0, %s52
      %s55 = sphi 0, %s54
      %s69 = sphi 0, %s55
      %s77 = sphi 0, %s79
      %s80 = sphi 0, %s77
      %s81 = sphi 0, %s80
      %s97 = sphi 0, %s81
      %s105 = sphi 0, %s107
      %s108 = sphi 0, %s105
      %s109 = sphi 0, %s108
      %s125 = sphi 0, %s109
    $region4: #{outconv_forward.1} parent=1 // loop_header_branch
      %14 = sbr.rel (%p12) target = $region8
    $region5: #{outconv_forward.1} parent=1 // loop_body
      %s16 = ssub.s32 %s11, 1
      %s17 = ssub.s32 %s11, 2
      %s24 = sadd.s32 1, %s19
      %p25 = scmp.ge.s32.totalorder %s24, 1
      %s26 = scalar_select %p25, 0, %s24
      %s27 = sadd.s32 1, %s18
      %s28 = scalar_select %p25, %s27, %s18
      %p29 = scmp.ge.s32.totalorder %s28, 2
      %s30 = scalar_select %p29, 0, %s28
      %s32 = sadd.s32 %s31, 1
      %p35 = scmp.eq.s32.totalorder %s11, 1
      %p36 = scmp.ne.s32.totalorder %s31, %s33
      %p37 = scmp.eq.s32.totalorder %s11, 0
      %p38 = por %p36, %p37
      %p39 = scmp.ne.s32.totalorder %s31, %s33
      %p40 = scmp.eq.s32.totalorder %s16, 1
      %p41 = por %p39, %p40
      %p42 = scmp.ne.s32.totalorder %s33, %s34
      %p43 = scmp.eq.s32.totalorder %s16, 0
      %p44 = por %p42, %p43
      %p45 = scmp.ne.s32.totalorder %s33, %s34
      %p46 = scmp.eq.s32.totalorder %s17, 1
      %p47 = por %p45, %p46
      %p49 = scmp.ne.s32.totalorder %s34, %s48
      %p50 = scmp.eq.s32.totalorder %s17, 0
      %p51 = por %p49, %p50
      %s53 = sadd.s32 %s52, 1
      %p56 = scmp.eq.s32.totalorder %s11, 1
      %p57 = scmp.ne.s32.totalorder %s52, %s54
      %p58 = scmp.eq.s32.totalorder %s11, 0
      %p59 = por %p57, %p58
      %p60 = scmp.ne.s32.totalorder %s52, %s54
      %p61 = scmp.eq.s32.totalorder %s16, 1
      %p62 = por %p60, %p61
      %p63 = scmp.ne.s32.totalorder %s54, %s55
      %p64 = scmp.eq.s32.totalorder %s16, 0
      %p65 = por %p63, %p64
      %p66 = scmp.ne.s32.totalorder %s54, %s55
      %p67 = scmp.eq.s32.totalorder %s17, 1
      %p68 = por %p66, %p67
      %p70 = scmp.ne.s32.totalorder %s55, %s69
      %p71 = scmp.eq.s32.totalorder %s17, 0
      %p72 = por %p70, %p71
      %s73 = ssub.s32 %s18, %s30
      %s74 = ssub.s32 %s19, %s26
      %s75 = sor.u32 %s73, %s74
      %p76 = scmp.eq.s32.totalorder %s75, 0
      %s78 = sadd.s32 %s77, 1
      %s79 = scalar_select %p76, %s77, %s78
      %p82 = pneg %p76
      %p83 = scmp.eq.s32.totalorder %s11, 1
      %p84 = por %p82, %p83
      %p85 = scmp.ne.s32.totalorder %s77, %s80
      %p86 = scmp.eq.s32.totalorder %s11, 0
      %p87 = por %p85, %p86
      %p88 = scmp.ne.s32.totalorder %s77, %s80
      %p89 = scmp.eq.s32.totalorder %s16, 1
      %p90 = por %p88, %p89
      %p91 = scmp.ne.s32.totalorder %s80, %s81
      %p92 = scmp.eq.s32.totalorder %s16, 0
      %p93 = por %p91, %p92
      %p94 = scmp.ne.s32.totalorder %s80, %s81
      %p95 = scmp.eq.s32.totalorder %s17, 1
      %p96 = por %p94, %p95
      %p98 = scmp.ne.s32.totalorder %s81, %s97
      %p99 = scmp.eq.s32.totalorder %s17, 0
      %p100 = por %p98, %p99
      %s101 = ssub.s32 %s18, %s30
      %s102 = ssub.s32 %s19, %s26
      %s103 = sor.u32 %s101, %s102
      %p104 = scmp.eq.s32.totalorder %s103, 0
      %s106 = sadd.s32 %s105, 1
      %s107 = scalar_select %p104, %s105, %s106
      %p110 = pneg %p104
      %p111 = scmp.eq.s32.totalorder %s11, 1
      %p112 = por %p110, %p111
      %p113 = scmp.ne.s32.totalorder %s105, %s108
      %p114 = scmp.eq.s32.totalorder %s11, 0
      %p115 = por %p113, %p114
      %p116 = scmp.ne.s32.totalorder %s105, %s108
      %p117 = scmp.eq.s32.totalorder %s16, 1
      %p118 = por %p116, %p117
      %p119 = scmp.ne.s32.totalorder %s108, %s109
      %p120 = scmp.eq.s32.totalorder %s16, 0
      %p121 = por %p119, %p120
      %p122 = scmp.ne.s32.totalorder %s108, %s109
      %p123 = scmp.eq.s32.totalorder %s17, 1
      %p124 = por %p122, %p123
      %p126 = scmp.ne.s32.totalorder %s109, %s125
      %p127 = scmp.eq.s32.totalorder %s17, 0
      %p128 = por %p126, %p127
      %p129 = scmp.le.s32.totalorder 1, %s11
      %p130 = scmp.lt.s32.totalorder %s11, 3
      %p131 = pnand %p129, %p130
      %p132 = pneg %p131
      // Predicated region
      $region9: #{outconv_forward.1} parent=5 // pred_check
        _
      $region10: #{outconv_forward.1} parent=5 // pred_check_branch
        %134 = sbr.rel (%p131) target = $region12
      $region11: #{outconv_forward.1} parent=5 // pred_region
        %s135 = ssub.s32 %s11, 1
        // Predicated region
        $region13: #{outconv_forward.1} parent=11 // pred_check
          %p136 = pneg %p44
        $region14: #{outconv_forward.1} parent=11 // pred_check_branch
          %138 = sbr.rel (%p136) target = $region16
        $region15: #{outconv_forward.1} parent=11 // pred_region
          %s140 = ssub.s32 16, 16
          %141 = vsyncadd [#allocation4], %s140
          %s143 = sshll.u32 %s0, 4
          %s144 = int_to_ptr.vmem [resolvable:$true] %s143
          %146 = dma.vmem_to_smem %s144, 16, [#allocation3], [#allocation4]
        $region16: #{outconv_forward.1} parent=11 // pred_fallthru
          _
        // Predicated region
        $region17: #{outconv_forward.1} parent=11 // pred_check
          %p147 = pneg %p65
        $region18: #{outconv_forward.1} parent=11 // pred_check_branch
          %149 = sbr.rel (%p147) target = $region20
        $region19: #{outconv_forward.1} parent=11 // pred_region
          _
        $region20: #{outconv_forward.1} parent=11 // pred_fallthru
          _
      $region12: #{outconv_forward.1} parent=5 // pred_fallthru
        _
      %p150 = scmp.lt.s32.totalorder %s11, 2
      // Predicated region
      $region21: #{outconv_forward.1} parent=5 // pred_check
        %p151 = pneg %p150
      $region22: #{outconv_forward.1} parent=5 // pred_check_branch
        %153 = sbr.rel (%p151) target = $region24
      $region23: #{outconv_forward.1} parent=5 // pred_region
        // Predicated region
        $region25: #{outconv_forward.1} parent=23 // pred_check
          %p154 = pneg %p87
        $region26: #{outconv_forward.1} parent=23 // pred_check_branch
          %156 = sbr.rel (%p154) target = $region28
        $region27: #{outconv_forward.1} parent=23 // pred_region
          %p157 = scmp.lt.s32.totalorder %s18, 1
          %s158 = scalar_select %p157, %s18, 1
          %p159 = scmp.lt.s32.totalorder %s19, 0
          %s160 = scalar_select %p159, %s19, 0
          %s161 = smul.addr %s158, 4
          %s162 = sadd.s32 %s160, %s161
          %s163 = smul.addr %s162, 2
          %s164 = scalar_lea.vmem %s2, %s163
        $region28: #{outconv_forward.1} parent=23 // pred_fallthru
          _
      $region24: #{outconv_forward.1} parent=5 // pred_fallthru
        _
      %p165 = scmp.le.s32.totalorder 1, %s11
      %p166 = scmp.lt.s32.totalorder %s11, 3
      %p167 = pnand %p165, %p166
      %p168 = pneg %p167
      // Predicated region
      $region29: #{outconv_forward.1} parent=5 // pred_check
        _
      $region30: #{outconv_forward.1} parent=5 // pred_check_branch
        %170 = sbr.rel (%p167) target = $region32
      $region31: #{outconv_forward.1} parent=5 // pred_region
        %s171 = ssub.s32 %s11, 1
        // Predicated region
        $region33: #{outconv_forward.1} parent=31 // pred_check
          %p172 = pneg %p44
        $region34: #{outconv_forward.1} parent=31 // pred_check_branch
          %174 = sbr.rel (%p172) target = $region36
        $region35: #{outconv_forward.1} parent=31 // pred_region
          %175 = dma.done [#allocation4], 16
        $region36: #{outconv_forward.1} parent=31 // pred_fallthru
          _
        %176 = sfence
        %p177 = pneg %p44
        %p178 = pneg %p41
        %p179 = pneg %p65
        %p180 = pneg %p62
        %p181 = scmp.lt.s32.totalorder %s20, 1
        %s182 = scalar_select %p181, %s20, 1
        %p183 = scmp.lt.s32.totalorder %s21, 0
        %s184 = scalar_select %p183, %s21, 0
        %s185 = smul.addr %s182, 4
        %s186 = sadd.s32 %s184, %s185
        %s187 = smul.addr %s186, 2
        %s188 = scalar_lea.vmem %s2, %s187
        %p189 = pneg %p93
        %p190 = pneg %p90
        %p191 = pneg %p121
        %p192 = pneg %p118
        %p193 = scmp.lt.s32.totalorder %s20, 1
        %s194 = scalar_select %p193, %s20, 1
        %p195 = scmp.lt.s32.totalorder %s21, 0
        %s196 = scalar_select %p195, %s21, 0
        %s197 = sadd.s32 %s196, %s194
        %s198 = smul.addr %s197, 2
        %s199 = scalar_lea.vmem %s3, %s198
        %p200 = scmp.lt.s32.totalorder %s20, 1
        %s201 = scalar_select %p200, %s20, 1
        %p202 = scmp.lt.s32.totalorder %s21, 0
        %s203 = scalar_select %p202, %s21, 0
        %s204 = smul.addr %s201, 4
        %s205 = sadd.s32 %s203, %s204
        %s206 = smul.addr %s205, 2
        %s207 = scalar_lea.vmem %s2, %s206
        %p208 = scmp.lt.s32.totalorder %s20, 1
        %s209 = scalar_select %p208, %s20, 1
        %p210 = scmp.lt.s32.totalorder %s21, 0
        %s211 = scalar_select %p210, %s21, 0
        %s212 = sadd.s32 %s211, %s209
        %s213 = smul.addr %s212, 2
        %s214 = scalar_lea.vmem %s3, %s213
        %v215 = vld [vmem:[%s207] sm:$0x3]
        %s216 = sld [smem:[#allocation3]]
        %v217 = vstv %s216
        %v218 = vmul.f32 %v215, %v217
        %s219 = sld [smem:[#allocation2]]
        %v220 = vstv %s219
        %v221 = vadd.f32 %v218, %v220
        %s222 = scalar_lea.vmem %s207, 2
        %v223 = vld [vmem:[%s222] sm:$0x3]
        %s224 = sld [smem:[#allocation3 + $0x1]]
        %v225 = vstv %s224
        %v226 = vmul.f32 %v223, %v225
        %v227 = vadd.f32 %v221, %v226
        %s228 = scalar_lea.vmem %s207, 4
        %v229 = vld [vmem:[%s228] sm:$0x3]
        %s230 = sld [smem:[#allocation3 + $0x2]]
        %v231 = vstv %s230
        %v232 = vmul.f32 %v229, %v231
        %v233 = vadd.f32 %v227, %v232
        %s234 = scalar_lea.vmem %s207, 6
        %v235 = vld [vmem:[%s234] sm:$0x3]
        %s236 = sld [smem:[#allocation3 + $0x3]]
        %v237 = vstv %s236
        %v238 = vmul.f32 %v235, %v237
        %v239 = vadd.f32 %v233, %v238
        %v240 = vsub.f32 0.0, %v239
        %v241 = vmul.f32 %v240, 1.442695
        %v242 = vpow.pop %v241
        %v243 = vadd.f32 %v242, 1.0
        %v244 = vrcp.pop %v243
        %v245 = vmul.f32 %v243, %v244
        %v246 = vsub.f32 2.0, %v245
        %v247 = vmul.f32 %v244, %v246
        %248 = vst [vmem:[%s214] sm:$0x3] %v247
        %p249 = scmp.lt.s32.totalorder %s20, 1
        %s250 = scalar_select %p249, %s20, 1
        %p251 = scmp.lt.s32.totalorder %s21, 0
        %s252 = scalar_select %p251, %s21, 0
        %s253 = sadd.s32 %s252, %s250
        %s254 = smul.addr %s253, 2
        %s255 = scalar_lea.vmem %s3, %s254
        // Predicated region
        $region37: #{outconv_forward.1} parent=31 // pred_check
          %p256 = pneg %p118
        $region38: #{outconv_forward.1} parent=31 // pred_check_branch
          %258 = sbr.rel (%p256) target = $region40
        $region39: #{outconv_forward.1} parent=31 // pred_region
          _
        $region40: #{outconv_forward.1} parent=31 // pred_fallthru
          _
      $region32: #{outconv_forward.1} parent=5 // pred_fallthru
        _
      %p259 = scmp.le.s32.totalorder 2, %s11
      // Predicated region
      $region41: #{outconv_forward.1} parent=5 // pred_check
        %p260 = pneg %p259
      $region42: #{outconv_forward.1} parent=5 // pred_check_branch
        %262 = sbr.rel (%p260) target = $region44
      $region43: #{outconv_forward.1} parent=5 // pred_region
        %s263 = ssub.s32 %s11, 2
        // Predicated region
        $region45: #{outconv_forward.1} parent=43 // pred_check
          %p264 = pneg %p124
        $region46: #{outconv_forward.1} parent=43 // pred_check_branch
          %266 = sbr.rel (%p264) target = $region48
        $region47: #{outconv_forward.1} parent=43 // pred_region
          %p267 = scmp.lt.s32.totalorder %s22, 1
          %s268 = scalar_select %p267, %s22, 1
          %p269 = scmp.lt.s32.totalorder %s23, 0
          %s270 = scalar_select %p269, %s23, 0
          %s271 = sadd.s32 %s270, %s268
          %s272 = smul.addr %s271, 2
          %s273 = scalar_lea.vmem %s3, %s272
        $region48: #{outconv_forward.1} parent=43 // pred_fallthru
          _
      $region44: #{outconv_forward.1} parent=5 // pred_fallthru
        _
    $region6: #{outconv_forward.1} parent=1 // loop_footer
      %s15 = sadd.s32 1, %s11
    $region7: #{outconv_forward.1} parent=1 // loop_footer_branch
      %10 = sbr.rel target = $region3
    $region8: #{outconv_forward.1} parent=1 // loop_exit
      _
    %274 = vsyncpa [#allocation4], 1
    %s275 = scalar_lea.sflag [#allocation4], 1
    %276 = vsyncpa %s275, 1

</llo_original>
